<compile_context>
chip_gen: v7x
topology: tpu7x:2x2x1
jax: 0.10.0
libtpu: 0.0.40
codegen_flags: <defaults>
</compile_context>

<pallas_src>
import functools

import jax
import jax.numpy as jnp
from jax.experimental import pallas as pl
from jax.experimental.pallas import tpu as pltpu


def highway_kernel(x_ref, w_ref, b_ref, o_ref, *, num_layers, padded_size):
    S = padded_size
    # Activation carried in registers/VMEM values, f32 throughout.
    x = x_ref[...].astype(jnp.float32)                     # (Bt, S)
    for l in range(num_layers):                            # static -> unrolled
        # One fused MXU matmul per layer; output columns = [gate | nonlin | lin].
        y = jnp.dot(x.astype(w_ref.dtype), w_ref[l],
                    preferred_element_type=jnp.float32) + b_ref[l]   # (Bt, 3S) f32
        gate = jax.nn.sigmoid(y[:, 0:S])
        nonlin = jnp.maximum(y[:, S:2 * S], 0.0)           # relu
        lin = y[:, 2 * S:3 * S]
        x = lin + gate * (nonlin - lin)                    # == gate*nl + (1-gate)*lin
    o_ref[...] = x.astype(o_ref.dtype)                     # single store, last layer


def _round_up(n, m):
    return ((n + m - 1) // m) * m


def highway_forward(x, wg, bg, wn, bn, wl, bl, *,
                    weight_dtype=jnp.bfloat16, batch_block=128):
    """x: (B, S); w*: (L, S, S) already (in, out); b*: (L, S)."""
    B, S = x.shape
    L = wg.shape[0]

    # Pad to hardware tiles: lanes (last dim) -> multiple of 128, sublanes -> 8.
    S_pad = _round_up(max(S, 128), 128)
    B_pad = _round_up(max(B, 8), 8)
    if B_pad > batch_block:
        B_pad = _round_up(B_pad, batch_block)
        block_b = batch_block
    else:
        block_b = B_pad

    def pad_w(w):
        return jnp.pad(w, ((0, 0), (0, S_pad - S), (0, S_pad - S)))

    def pad_b(b):
        return jnp.pad(b, ((0, 0), (0, S_pad - S)))

    # Fused parameters: y = x @ W_cat + b_cat with columns [gate | nonlinear | linear].
    w_cat = jnp.concatenate([pad_w(wg), pad_w(wn), pad_w(wl)],
                            axis=-1).astype(weight_dtype)          # (L, S_pad, 3*S_pad)
    b_cat = jnp.concatenate([pad_b(bg), pad_b(bn), pad_b(bl)],
                            axis=-1)[:, None, :].astype(jnp.float32)  # (L, 1, 3*S_pad)
    x_pad = jnp.pad(x, ((0, B_pad - B), (0, S_pad - S)))

    kernel = functools.partial(highway_kernel, num_layers=L, padded_size=S_pad)

    out = pl.pallas_call(
        kernel,
        out_shape=jax.ShapeDtypeStruct((B_pad, S_pad), x.dtype),
        grid_spec=pltpu.PrefetchScalarGridSpec(
            num_scalar_prefetch=0,
            grid=(B_pad // block_b,),                       # batch tiles only
            in_specs=[
                pl.BlockSpec((block_b, S_pad), lambda i: (i, 0)),
                pl.BlockSpec((L, S_pad, 3 * S_pad), lambda i: (0, 0, 0)),
                pl.BlockSpec((L, 1, 3 * S_pad), lambda i: (0, 0, 0)),
            ],
            out_specs=pl.BlockSpec((block_b, S_pad), lambda i: (i, 0)),
        ),
        compiler_params=pltpu.CompilerParams(
            dimension_semantics=("parallel",)),
    )(x_pad, w_cat, b_cat)

    return out[:B, :S]


def highway_reference(x, wg, bg, wn, bn, wl, bl, weight_dtype=jnp.float32):
    """Pure-JAX reference matching the PyTorch forward (with the same optional
    bf16 weight storage the kernel uses, so the check isolates kernel bugs)."""
    L = wg.shape[0]
    for l in range(L):
        xq = x.astype(weight_dtype)

        def aff(w, b, l=l, xq=xq):
            return jnp.dot(xq, w[l].astype(weight_dtype),
                           preferred_element_type=jnp.float32) + b[l]

        gate = jax.nn.sigmoid(aff(wg, bg))
        nonlinear = jax.nn.relu(aff(wn, bn))
        linear = aff(wl, bl)
        x = gate * nonlinear + (1.0 - gate) * linear
    return x


if __name__ == "__main__":
    batch = 4
    size = 32          # conf.size
    num_layers = 3     # conf.num_layers

    key = jax.random.PRNGKey(0)
    keys = jax.random.split(key, 8)

    x = jax.random.normal(keys[0], (batch, size), dtype=jnp.float32)

    # Deterministic synthetic parameters (PyTorch uses orthogonal init; the
    # forward semantics do not depend on the init scheme).
    scale = 1.0 / jnp.sqrt(jnp.float32(size))
    wg = jax.random.normal(keys[1], (num_layers, size, size), jnp.float32) * scale
    wn = jax.random.normal(keys[2], (num_layers, size, size), jnp.float32) * scale
    wl = jax.random.normal(keys[3], (num_layers, size, size), jnp.float32) * scale
    bg = jax.random.normal(keys[4], (num_layers, size), jnp.float32) * 0.1
    bn = jax.random.normal(keys[5], (num_layers, size), jnp.float32) * 0.1
    bl = jax.random.normal(keys[6], (num_layers, size), jnp.float32) * 0.1

    out = highway_forward(x, wg, bg, wn, bn, wl, bl, weight_dtype=jnp.bfloat16)
    out = jax.block_until_ready(out)

    # Reference uses the same bf16-rounded weights (f32 accumulation) so the
    # comparison checks the kernel, not the intentional bf16 storage choice.
    ref = highway_reference(x, wg, bg, wn, bn, wl, bl, weight_dtype=jnp.bfloat16)
    assert out.shape == (batch, size)
    assert jnp.allclose(out, ref, atol=1e-4, rtol=1e-4), "mismatch vs reference"

    print("KERNEL_OK")
</pallas_src>

<mosaic_0001>
module attributes {stable_mosaic.version = 11 : i64} {
  func.func @highway_kernel(%arg0: i32, %arg1: memref<8x128xf32, #tpu.memory_space<vmem>>, %arg2: memref<3x128x384xbf16, #tpu.memory_space<vmem>>, %arg3: memref<3x1x384xf32, #tpu.memory_space<vmem>>, %arg4: memref<8x128xf32, #tpu.memory_space<vmem>>) attributes {dimension_semantics = [#tpu.dimension_semantics<parallel>], iteration_bounds = array<i64: 1>, scalar_prefetch = 0 : i64, scratch_operands = 0 : i64, tpu.core_type = #tpu.core_type<tc>, window_params = [{transform_indices = @transform_0, window_bounds = array<i64: 8, 128>}, {pipeline_mode = #tpu.pipeline_mode<synchronous>, transform_indices = @transform_1, window_bounds = array<i64: 3, 128, 384>}, {pipeline_mode = #tpu.pipeline_mode<synchronous>, transform_indices = @transform_2, window_bounds = array<i64: 3, 1, 384>}, {transform_indices = @transform_3, window_bounds = array<i64: 8, 128>}]} {
    %c0 = arith.constant 0 : index
    %c0_0 = arith.constant 0 : index
    %0 = vector.load %arg1[%c0, %c0_0] : memref<8x128xf32, #tpu.memory_space<vmem>>, vector<8x128xf32>
    %1 = arith.truncf %0 : vector<8x128xf32> to vector<8x128xbf16>
    %c0_1 = arith.constant 0 : index
    %c0_2 = arith.constant 0 : index
    %c0_3 = arith.constant 0 : index
    %2 = vector.load %arg2[%c0_1, %c0_2, %c0_3] : memref<3x128x384xbf16, #tpu.memory_space<vmem>>, vector<1x128x384xbf16>
    %3 = vector.shape_cast %2 : vector<1x128x384xbf16> to vector<128x384xbf16>
    %cst = arith.constant dense<0.000000e+00> : vector<8x384xf32>
    %4 = tpu.matmul %1, %3, %cst {dimension_numbers = #tpu.dot_dimension_numbers<[1], [0], [0], [1], [0, 0, 1, 1], [], []>} : vector<8x128xbf16>, vector<128x384xbf16>, vector<8x384xf32> -> vector<8x384xf32>
    %c0_4 = arith.constant 0 : index
    %c0_5 = arith.constant 0 : index
    %c0_6 = arith.constant 0 : index
    %5 = vector.load %arg3[%c0_4, %c0_5, %c0_6] : memref<3x1x384xf32, #tpu.memory_space<vmem>>, vector<1x1x384xf32>
    %6 = vector.shape_cast %5 : vector<1x1x384xf32> to vector<1x384xf32>
    %7 = vector.broadcast %6 : vector<1x384xf32> to vector<8x384xf32>
    %8 = arith.addf %4, %7 : vector<8x384xf32>
    %9 = vector.extract_strided_slice %8 {offsets = [0, 0], sizes = [8, 128], strides = [1, 1]} : vector<8x384xf32> to vector<8x128xf32>
    %10 = arith.negf %9 : vector<8x128xf32>
    %11 = math.exp %10 : vector<8x128xf32>
    %cst_7 = arith.constant 1.000000e+00 : f32
    %12 = vector.broadcast %cst_7 : f32 to vector<8x128xf32>
    %13 = arith.addf %12, %11 : vector<8x128xf32>
    %14 = arith.divf %12, %13 : vector<8x128xf32>
    %15 = vector.extract_strided_slice %8 {offsets = [0, 128], sizes = [8, 128], strides = [1, 1]} : vector<8x384xf32> to vector<8x128xf32>
    %cst_8 = arith.constant 0.000000e+00 : f32
    %16 = vector.broadcast %cst_8 : f32 to vector<8x128xf32>
    %17 = arith.maximumf %15, %16 : vector<8x128xf32>
    %18 = vector.extract_strided_slice %8 {offsets = [0, 256], sizes = [8, 128], strides = [1, 1]} : vector<8x384xf32> to vector<8x128xf32>
    %19 = arith.subf %17, %18 : vector<8x128xf32>
    %20 = arith.mulf %14, %19 : vector<8x128xf32>
    %21 = arith.addf %18, %20 : vector<8x128xf32>
    %22 = arith.truncf %21 : vector<8x128xf32> to vector<8x128xbf16>
    %c1 = arith.constant 1 : index
    %c0_9 = arith.constant 0 : index
    %c0_10 = arith.constant 0 : index
    %23 = vector.load %arg2[%c1, %c0_9, %c0_10] : memref<3x128x384xbf16, #tpu.memory_space<vmem>>, vector<1x128x384xbf16>
    %24 = vector.shape_cast %23 : vector<1x128x384xbf16> to vector<128x384xbf16>
    %cst_11 = arith.constant dense<0.000000e+00> : vector<8x384xf32>
    %25 = tpu.matmul %22, %24, %cst_11 {dimension_numbers = #tpu.dot_dimension_numbers<[1], [0], [0], [1], [0, 0, 1, 1], [], []>} : vector<8x128xbf16>, vector<128x384xbf16>, vector<8x384xf32> -> vector<8x384xf32>
    %c1_12 = arith.constant 1 : index
    %c0_13 = arith.constant 0 : index
    %c0_14 = arith.constant 0 : index
    %26 = vector.load %arg3[%c1_12, %c0_13, %c0_14] : memref<3x1x384xf32, #tpu.memory_space<vmem>>, vector<1x1x384xf32>
    %27 = vector.shape_cast %26 : vector<1x1x384xf32> to vector<1x384xf32>
    %28 = vector.broadcast %27 : vector<1x384xf32> to vector<8x384xf32>
    %29 = arith.addf %25, %28 : vector<8x384xf32>
    %30 = vector.extract_strided_slice %29 {offsets = [0, 0], sizes = [8, 128], strides = [1, 1]} : vector<8x384xf32> to vector<8x128xf32>
    %31 = arith.negf %30 : vector<8x128xf32>
    %32 = math.exp %31 : vector<8x128xf32>
    %cst_15 = arith.constant 1.000000e+00 : f32
    %33 = vector.broadcast %cst_15 : f32 to vector<8x128xf32>
    %34 = arith.addf %33, %32 : vector<8x128xf32>
    %35 = arith.divf %33, %34 : vector<8x128xf32>
    %36 = vector.extract_strided_slice %29 {offsets = [0, 128], sizes = [8, 128], strides = [1, 1]} : vector<8x384xf32> to vector<8x128xf32>
    %cst_16 = arith.constant 0.000000e+00 : f32
    %37 = vector.broadcast %cst_16 : f32 to vector<8x128xf32>
    %38 = arith.maximumf %36, %37 : vector<8x128xf32>
    %39 = vector.extract_strided_slice %29 {offsets = [0, 256], sizes = [8, 128], strides = [1, 1]} : vector<8x384xf32> to vector<8x128xf32>
    %40 = arith.subf %38, %39 : vector<8x128xf32>
    %41 = arith.mulf %35, %40 : vector<8x128xf32>
    %42 = arith.addf %39, %41 : vector<8x128xf32>
    %43 = arith.truncf %42 : vector<8x128xf32> to vector<8x128xbf16>
    %c2 = arith.constant 2 : index
    %c0_17 = arith.constant 0 : index
    %c0_18 = arith.constant 0 : index
    %44 = vector.load %arg2[%c2, %c0_17, %c0_18] : memref<3x128x384xbf16, #tpu.memory_space<vmem>>, vector<1x128x384xbf16>
    %45 = vector.shape_cast %44 : vector<1x128x384xbf16> to vector<128x384xbf16>
    %cst_19 = arith.constant dense<0.000000e+00> : vector<8x384xf32>
    %46 = tpu.matmul %43, %45, %cst_19 {dimension_numbers = #tpu.dot_dimension_numbers<[1], [0], [0], [1], [0, 0, 1, 1], [], []>} : vector<8x128xbf16>, vector<128x384xbf16>, vector<8x384xf32> -> vector<8x384xf32>
    %c2_20 = arith.constant 2 : index
    %c0_21 = arith.constant 0 : index
    %c0_22 = arith.constant 0 : index
    %47 = vector.load %arg3[%c2_20, %c0_21, %c0_22] : memref<3x1x384xf32, #tpu.memory_space<vmem>>, vector<1x1x384xf32>
    %48 = vector.shape_cast %47 : vector<1x1x384xf32> to vector<1x384xf32>
    %49 = vector.broadcast %48 : vector<1x384xf32> to vector<8x384xf32>
    %50 = arith.addf %46, %49 : vector<8x384xf32>
    %51 = vector.extract_strided_slice %50 {offsets = [0, 0], sizes = [8, 128], strides = [1, 1]} : vector<8x384xf32> to vector<8x128xf32>
    %52 = arith.negf %51 : vector<8x128xf32>
    %53 = math.exp %52 : vector<8x128xf32>
    %cst_23 = arith.constant 1.000000e+00 : f32
    %54 = vector.broadcast %cst_23 : f32 to vector<8x128xf32>
    %55 = arith.addf %54, %53 : vector<8x128xf32>
    %56 = arith.divf %54, %55 : vector<8x128xf32>
    %57 = vector.extract_strided_slice %50 {offsets = [0, 128], sizes = [8, 128], strides = [1, 1]} : vector<8x384xf32> to vector<8x128xf32>
    %cst_24 = arith.constant 0.000000e+00 : f32
    %58 = vector.broadcast %cst_24 : f32 to vector<8x128xf32>
    %59 = arith.maximumf %57, %58 : vector<8x128xf32>
    %60 = vector.extract_strided_slice %50 {offsets = [0, 256], sizes = [8, 128], strides = [1, 1]} : vector<8x384xf32> to vector<8x128xf32>
    %61 = arith.subf %59, %60 : vector<8x128xf32>
    %62 = arith.mulf %56, %61 : vector<8x128xf32>
    %63 = arith.addf %60, %62 : vector<8x128xf32>
    %c0_25 = arith.constant 0 : index
    %c0_26 = arith.constant 0 : index
    %64 = vector.load %arg4[%c0_25, %c0_26] : memref<8x128xf32, #tpu.memory_space<vmem>>, vector<8x128xf32>
    tpu.vector_store %arg4[%c0_25, %c0_26], %63 {strides = array<i32>} : memref<8x128xf32, #tpu.memory_space<vmem>>, vector<8x128xf32>,
    return
  }
  func.func @transform_0(%arg0: i32) -> (i32, i32) {
    %c0_i32 = arith.constant 0 : i32
    %c0_i32_0 = arith.constant 0 : i32
    return %arg0, %c0_i32 : i32, i32
  }
  func.func @transform_1(%arg0: i32) -> (i32, i32, i32) {
    %c0_i32 = arith.constant 0 : i32
    %c0_i32_0 = arith.constant 0 : i32
    %c0_i32_1 = arith.constant 0 : i32
    %c0_i32_2 = arith.constant 0 : i32
    return %c0_i32, %c0_i32_0, %c0_i32_1 : i32, i32, i32
  }
  func.func @transform_2(%arg0: i32) -> (i32, i32, i32) {
    %c0_i32 = arith.constant 0 : i32
    %c0_i32_0 = arith.constant 0 : i32
    %c0_i32_1 = arith.constant 0 : i32
    %c0_i32_2 = arith.constant 0 : i32
    return %c0_i32, %c0_i32_0, %c0_i32_1 : i32, i32, i32
  }
  func.func @transform_3(%arg0: i32) -> (i32, i32) {
    %c0_i32 = arith.constant 0 : i32
    %c0_i32_0 = arith.constant 0 : i32
    return %arg0, %c0_i32 : i32, i32
  }
}

</mosaic_0001>

<llo_original>
// kernel: tpu_custom_call.1
$region0: #{tpu_custom_call.1}
  #allocation0 [shape = 'u32[]', space=smem, size = 0x4, offset = 0x4, fixed_abs, tag = 'smem constant byte address 0x4 - core index']
  #allocation1 [shape = 'u32[144,128]{1,0:T(1,128)}', space=vmem, size = 0x12000, scoped, tag = 'internal scratch']
  %s0 = inlined_call_operand.hbm [shape: f32[8,128], index: 0, kind: input, shape index: {}]
  %s1 = inlined_call_operand.hbm [shape: bf16[3,128,384], index: 1, kind: input, shape index: {}]
  %s2 = inlined_call_operand.hbm [shape: f32[3,1,384], index: 2, kind: input, shape index: {}]
  %s3 = inlined_call_operand.hbm [shape: f32[8,128], index: 3, kind: output, shape index: {}]
  %s4 = sld [smem:[#allocation0]]
  $region34: #{tpu_custom_call.1} parent=0
    _
  %s6 = ssub.s32 1, %s4
  %s7 = scalar_select 0, %s6, %s4
  $region1: #{tpu_custom_call.1} parent=0
    #allocation2 [shape = 'u8[4096]{0}', space=vmem, size = 0x1000, scoped, tag = 'input window, operand 0, single buffered']
    #allocation3 [shape = 's32[1]{0}', space=sflag, size = 0x4, scoped, tag = 'scoped memory for tpu_custom_call.1']
    #allocation4 [shape = 's32[1]{0}', space=sflag, size = 0x4, scoped, tag = 'scoped memory for tpu_custom_call.1']
    #allocation5 [shape = 'u8[294912]{0}', space=vmem, size = 0x48000, scoped, tag = 'input window, operand 1, single buffered']
    #allocation6 [shape = 's32[1]{0}', space=sflag, size = 0x4, scoped, tag = 'scoped memory for tpu_custom_call.1']
    #allocation7 [shape = 'u8[4608]{0}', space=vmem, size = 0x1400, scoped, tag = 'input window, operand 2, single buffered']
    #allocation8 [shape = 'u8[4096]{0}', space=vmem, size = 0x1000, scoped, tag = 'output window, operand 0, single buffered']
    %8 = vsyncpa [#allocation3], 0
    %9 = vsyncpa [#allocation6], 0
    %10 = vsyncpa [#allocation4], 0
    // Predicated region
    $region2: #{tpu_custom_call.1} parent=1 // pred_check
      _
    $region3: #{tpu_custom_call.1} parent=1 // pred_check_branch
      %12 = sbr.rel (0) target = $region5
    $region4: #{tpu_custom_call.1} parent=1 // pred_region
      %s14 = ssub.s32 128, 128
      %15 = vsyncadd [#allocation3], %s14
      %s17 = sshll.u32 [#allocation2], 4
      %s18 = int_to_ptr.vmem [resolvable:$true] %s17
      %20 = dma.hbm_to_vmem [thread:$0]  %s0, 128, %s18, [#allocation3]
    $region5: #{tpu_custom_call.1} parent=1 // pred_fallthru
      _
    // Predicated region
    $region6: #{tpu_custom_call.1} parent=1 // pred_check
      _
    $region7: #{tpu_custom_call.1} parent=1 // pred_check_branch
      %22 = sbr.rel (0) target = $region9
    $region8: #{tpu_custom_call.1} parent=1 // pred_region
      %s24 = ssub.s32 9216, 9216
      %25 = vsyncadd [#allocation6], %s24
      %s26 = sshll.u32 [#allocation5], 4
      %s27 = int_to_ptr.vmem [resolvable:$true] %s26
      %32 = dma.hbm_to_vmem [thread:$0]  %s1, 9216, %s27, [#allocation6], 192, 192, 12
    $region9: #{tpu_custom_call.1} parent=1 // pred_fallthru
      _
    // Predicated region
    $region10: #{tpu_custom_call.1} parent=1 // pred_check
      _
    $region11: #{tpu_custom_call.1} parent=1 // pred_check_branch
      %34 = sbr.rel (0) target = $region13
    $region12: #{tpu_custom_call.1} parent=1 // pred_region
      %s36 = ssub.s32 144, 144
      %37 = vsyncadd [#allocation6], %s36
      %s38 = sshll.u32 [#allocation7], 4
      %s39 = int_to_ptr.vmem [resolvable:$true] %s38
      %44 = dma.hbm_to_vmem [thread:$0]  %s2, 144, %s39, [#allocation6], 48, 48, 3
    $region13: #{tpu_custom_call.1} parent=1 // pred_fallthru
      _
    // Predicated region
    $region14: #{tpu_custom_call.1} parent=1 // pred_check
      _
    $region15: #{tpu_custom_call.1} parent=1 // pred_check_branch
      %46 = sbr.rel (0) target = $region17
    $region16: #{tpu_custom_call.1} parent=1 // pred_region
      %47 = dma.done [#allocation3], 128
    $region17: #{tpu_custom_call.1} parent=1 // pred_fallthru
      _
    // Predicated region
    $region18: #{tpu_custom_call.1} parent=1 // pred_check
      _
    $region19: #{tpu_custom_call.1} parent=1 // pred_check_branch
      %49 = sbr.rel (0) target = $region21
    $region20: #{tpu_custom_call.1} parent=1 // pred_region
      %50 = dma.done [#allocation6], 9216
    $region21: #{tpu_custom_call.1} parent=1 // pred_fallthru
      _
    // Predicated region
    $region22: #{tpu_custom_call.1} parent=1 // pred_check
      _
    $region23: #{tpu_custom_call.1} parent=1 // pred_check_branch
      %52 = sbr.rel (0) target = $region25
    $region24: #{tpu_custom_call.1} parent=1 // pred_region
      %53 = dma.done [#allocation6], 144
    $region25: #{tpu_custom_call.1} parent=1 // pred_fallthru
      _
    %v55 = vld [vmem:[#allocation2] sm:$0xff]
    %v56 = vpack.c.bf16 %v55, %v55
    %v57 = vld [vmem:[#allocation5] sm:$0xff]
    %v58 = vld [vmem:[#allocation5 + $0x8] sm:$0xf]
    %v59 = vld [vmem:[#allocation5 + $0xc] sm:$0xff]
    %v60 = vld [vmem:[#allocation5 + $0x14] sm:$0xf]
    %v61 = vld [vmem:[#allocation5 + $0x18] sm:$0xff]
    %v62 = vld [vmem:[#allocation5 + $0x20] sm:$0xf]
    %v63 = vld [vmem:[#allocation5 + $0x24] sm:$0xff]
    %v64 = vld [vmem:[#allocation5 + $0x2c] sm:$0xf]
    %v65 = vld [vmem:[#allocation5 + $0x30] sm:$0xff]
    %v66 = vld [vmem:[#allocation5 + $0x38] sm:$0xf]
    %v67 = vld [vmem:[#allocation5 + $0x3c] sm:$0xff]
    %v68 = vld [vmem:[#allocation5 + $0x44] sm:$0xf]
    %v69 = vld [vmem:[#allocation5 + $0x48] sm:$0xff]
    %v70 = vld [vmem:[#allocation5 + $0x50] sm:$0xf]
    %v71 = vld [vmem:[#allocation5 + $0x54] sm:$0xff]
    %v72 = vld [vmem:[#allocation5 + $0x5c] sm:$0xf]
    %v73 = vld [vmem:[#allocation5 + $0x60] sm:$0xff]
    %v74 = vld [vmem:[#allocation5 + $0x68] sm:$0xf]
    %v75 = vld [vmem:[#allocation5 + $0x6c] sm:$0xff]
    %v76 = vld [vmem:[#allocation5 + $0x74] sm:$0xf]
    %v77 = vld [vmem:[#allocation5 + $0x78] sm:$0xff]
    %v78 = vld [vmem:[#allocation5 + $0x80] sm:$0xf]
    %v79 = vld [vmem:[#allocation5 + $0x84] sm:$0xff]
    %v80 = vld [vmem:[#allocation5 + $0x8c] sm:$0xf]
    %v81 = vld [vmem:[#allocation5 + $0x90] sm:$0xff]
    %v82 = vld [vmem:[#allocation5 + $0x98] sm:$0xf]
    %v83 = vld [vmem:[#allocation5 + $0x9c] sm:$0xff]
    %v84 = vld [vmem:[#allocation5 + $0xa4] sm:$0xf]
    %v85 = vld [vmem:[#allocation5 + $0xa8] sm:$0xff]
    %v86 = vld [vmem:[#allocation5 + $0xb0] sm:$0xf]
    %v87 = vld [vmem:[#allocation5 + $0xb4] sm:$0xff]
    %v88 = vld [vmem:[#allocation5 + $0xbc] sm:$0xf]
    %v89 = vld [vmem:[#allocation7] sm:$0x7]
    %v91 = vlaneseq
    %v92 = vshrl.u32 %v91, 7
    %v93 = vsub.s32 0, %v92
    %v94 = vrot.slane %v89, %v93
    %v95 = vlaneseq
    %v96 = vshrl.u32 %v95, 7
    %v97 = vsub.s32 1, %v96
    %v98 = vrot.slane %v89, %v97
    %v99 = vlaneseq
    %v100 = vshrl.u32 %v99, 7
    %v101 = vsub.s32 2, %v100
    %v102 = vrot.slane %v89, %v101
    %v138 = vunpack.c.l.b16 %v57
    %v139 = vunpack.c.h.b16 %v57
    %v140 = vunpack.c.l.b16 %v58
    %v141 = vunpack.c.l.b16 %v59
    %v142 = vunpack.c.h.b16 %v59
    %v143 = vunpack.c.l.b16 %v60
    %v144 = vunpack.c.l.b16 %v61
    %v145 = vunpack.c.h.b16 %v61
    %v146 = vunpack.c.l.b16 %v62
    %v147 = vunpack.c.l.b16 %v63
    %v148 = vunpack.c.h.b16 %v63
    %v149 = vunpack.c.l.b16 %v64
    %v150 = vunpack.c.l.b16 %v65
    %v151 = vunpack.c.h.b16 %v65
    %v152 = vunpack.c.l.b16 %v66
    %v153 = vunpack.c.l.b16 %v67
    %v154 = vunpack.c.h.b16 %v67
    %v155 = vunpack.c.l.b16 %v68
    %v156 = vunpack.c.l.b16 %v69
    %v157 = vunpack.c.h.b16 %v69
    %v158 = vunpack.c.l.b16 %v70
    %v159 = vunpack.c.l.b16 %v71
    %v160 = vunpack.c.h.b16 %v71
    %v161 = vunpack.c.l.b16 %v72
    %v162 = vunpack.c.l.b16 %v73
    %v163 = vunpack.c.h.b16 %v73
    %v164 = vunpack.c.l.b16 %v74
    %v165 = vunpack.c.l.b16 %v75
    %v166 = vunpack.c.h.b16 %v75
    %v167 = vunpack.c.l.b16 %v76
    %v168 = vunpack.c.l.b16 %v77
    %v169 = vunpack.c.h.b16 %v77
    %v170 = vunpack.c.l.b16 %v78
    %v171 = vunpack.c.l.b16 %v79
    %v172 = vunpack.c.h.b16 %v79
    %v173 = vunpack.c.l.b16 %v80
    %v174 = vunpack.c.l.b16 %v81
    %v175 = vunpack.c.h.b16 %v81
    %v176 = vunpack.c.l.b16 %v82
    %v177 = vunpack.c.l.b16 %v83
    %v178 = vunpack.c.h.b16 %v83
    %v179 = vunpack.c.l.b16 %v84
    %v180 = vunpack.c.l.b16 %v85
    %v181 = vunpack.c.h.b16 %v85
    %v182 = vunpack.c.l.b16 %v86
    %v183 = vunpack.c.l.b16 %v87
    %v184 = vunpack.c.h.b16 %v87
    %v185 = vunpack.c.l.b16 %v88
    %v186 = vpack.c.b16 %v141, %v138
    %v187 = vpack.c.b16 %v142, %v139
    %v188 = vpack.c.b16 %v143, %v140
    %v189 = vpack.c.b16 %v147, %v144
    %v190 = vpack.c.b16 %v148, %v145
    %v191 = vpack.c.b16 %v149, %v146
    %v192 = vpack.c.b16 %v153, %v150
    %v193 = vpack.c.b16 %v154, %v151
    %v194 = vpack.c.b16 %v155, %v152
    %v195 = vpack.c.b16 %v159, %v156
    %v196 = vpack.c.b16 %v160, %v157
    %v197 = vpack.c.b16 %v161, %v158
    %v198 = vpack.c.b16 %v165, %v162
    %v199 = vpack.c.b16 %v166, %v163
    %v200 = vpack.c.b16 %v167, %v164
    %v201 = vpack.c.b16 %v171, %v168
    %v202 = vpack.c.b16 %v172, %v169
    %v203 = vpack.c.b16 %v173, %v170
    %v204 = vpack.c.b16 %v177, %v174
    %v205 = vpack.c.b16 %v178, %v175
    %v206 = vpack.c.b16 %v179, %v176
    %v207 = vpack.c.b16 %v183, %v180
    %v208 = vpack.c.b16 %v184, %v181
    %v209 = vpack.c.b16 %v185, %v182
    %234 = vmatprep.subr.bf16.mxu0 %v187
    %235 = vmatpush1.bf16.msra.mxu0 %v186
    %236 = vmatprep.subr.bf16.mxu0 %v190
    %237 = vmatpush1.bf16.msra.mxu0 %v189
    %238 = vmatprep.subr.bf16.mxu0 %v193
    %239 = vmatpush1.bf16.msra.mxu0 %v192
    %240 = vmatprep.subr.bf16.mxu0 %v196
    %241 = vmatpush1.bf16.msra.mxu0 %v195
    %242 = vmatprep.subr.bf16.mxu0 %v199
    %243 = vmatpush1.bf16.msra.mxu0 %v198
    %244 = vmatprep.subr.bf16.mxu0 %v202
    %245 = vmatpush1.bf16.msra.mxu0 %v201
    %246 = vmatprep.subr.bf16.mxu0 %v205
    %247 = vmatpush1.bf16.msra.mxu0 %v204
    %248 = vmatprep.subr.bf16.mxu0 %v208
    %249 = vmatpush1.bf16.msra.mxu0 %v207
    %250 = vmatprep.subr.bf16.mxu0 0
    %251 = vmatpush1.bf16.msra.mxu0 0
    %252 = vmatprep.subr.bf16.mxu0 0
    %253 = vmatpush1.bf16.msra.mxu0 0
    %254 = vmatprep.subr.bf16.mxu0 0
    %255 = vmatpush1.bf16.msra.mxu0 0
    %256 = vmatprep.subr.bf16.mxu0 0
    %257 = vmatpush1.bf16.msra.mxu0 0
    %258 = vmatprep.subr.bf16.mxu0 0
    %259 = vmatpush1.bf16.msra.mxu0 0
    %260 = vmatprep.subr.bf16.mxu0 0
    %261 = vmatpush1.bf16.msra.mxu0 0
    %262 = vmatprep.subr.bf16.mxu0 0
    %263 = vmatpush1.bf16.msra.mxu0 0
    %264 = vmatprep.subr.bf16.mxu0 0
    %265 = vmatpush1.bf16.msra.mxu0 0
    %266 = vmatprep.mubr.bf16.mxu0 0
    %267 = vmatmul.mubr.bf16.gmra.mrb[0].mxu0 %v56
    %v268 = vpop.f32.mrb[0].mxu0
    %v269 = vadd.f32 %v94, %v268
    %v270 = vpop.f32.mrb[0].mxu0
    %v271 = vadd.f32 %v98, %v270
    %v272 = vpop.f32.mrb[0].mxu0
    %v273 = vpop.f32.mrb[0].mxu0
    %274 = vdwg.mxu0
    %275 = vmatprep.subr.bf16.mxu0 0
    %276 = vmatpush1.bf16.msra.mxu0 %v188
    %277 = vmatprep.subr.bf16.mxu0 0
    %278 = vmatpush1.bf16.msra.mxu0 %v191
    %279 = vmatprep.subr.bf16.mxu0 0
    %280 = vmatpush1.bf16.msra.mxu0 %v194
    %281 = vmatprep.subr.bf16.mxu0 0
    %282 = vmatpush1.bf16.msra.mxu0 %v197
    %283 = vmatprep.subr.bf16.mxu0 0
    %284 = vmatpush1.bf16.msra.mxu0 %v200
    %285 = vmatprep.subr.bf16.mxu0 0
    %286 = vmatpush1.bf16.msra.mxu0 %v203
    %287 = vmatprep.subr.bf16.mxu0 0
    %288 = vmatpush1.bf16.msra.mxu0 %v206
    %289 = vmatprep.subr.bf16.mxu0 0
    %290 = vmatpush1.bf16.msra.mxu0 %v209
    %291 = vmatprep.subr.bf16.mxu0 0
    %292 = vmatpush1.bf16.msra.mxu0 0
    %293 = vmatprep.subr.bf16.mxu0 0
    %294 = vmatpush1.bf16.msra.mxu0 0
    %295 = vmatprep.subr.bf16.mxu0 0
    %296 = vmatpush1.bf16.msra.mxu0 0
    %297 = vmatprep.subr.bf16.mxu0 0
    %298 = vmatpush1.bf16.msra.mxu0 0
    %299 = vmatprep.subr.bf16.mxu0 0
    %300 = vmatpush1.bf16.msra.mxu0 0
    %301 = vmatprep.subr.bf16.mxu0 0
    %302 = vmatpush1.bf16.msra.mxu0 0
    %303 = vmatprep.subr.bf16.mxu0 0
    %304 = vmatpush1.bf16.msra.mxu0 0
    %305 = vmatprep.subr.bf16.mxu0 0
    %306 = vmatpush1.bf16.msra.mxu0 0
    %307 = vmatprep.mubr.bf16.mxu0 0
    %308 = vmatmul.mubr.bf16.gmra.mrb[0].mxu0 %v56
    %v309 = vpop.f32.mrb[0].mxu0
    %v310 = vadd.f32 %v102, %v309
    %v311 = vpop.f32.mrb[0].mxu0
    %v312 = vpop.f32.mrb[0].mxu0
    %v313 = vpop.f32.mrb[0].mxu0
    %314 = vdwg.mxu0
    %v315 = vxor.u32 %v269, 2147483648
    %v316 = vmul.f32 %v315, 1.442695
    %v317 = vpow.pop %v316
    %v318 = vadd.f32 %v317, 1.0
    %v319 = vrcp.pop %v318
    %v320 = vmul.f32 1.0, %v319
    %v321 = vmax.f32 %v271, 0.0
    %v322 = vsub.f32 %v321, %v310
    %v323 = vmul.f32 %v320, %v322
    %v324 = vadd.f32 %v310, %v323
    %v325 = vpack.c.bf16 %v324, %v324
    %s326 = scalar_lea.vmem [#allocation5], 192
    %v327 = vld [vmem:[%s326] sm:$0xff]
    %v328 = vld [vmem:[%s326 + $0x8] sm:$0xf]
    %v329 = vld [vmem:[%s326 + $0xc] sm:$0xff]
    %v330 = vld [vmem:[%s326 + $0x14] sm:$0xf]
    %v331 = vld [vmem:[%s326 + $0x18] sm:$0xff]
    %v332 = vld [vmem:[%s326 + $0x20] sm:$0xf]
    %v333 = vld [vmem:[%s326 + $0x24] sm:$0xff]
    %v334 = vld [vmem:[%s326 + $0x2c] sm:$0xf]
    %v335 = vld [vmem:[%s326 + $0x30] sm:$0xff]
    %v336 = vld [vmem:[%s326 + $0x38] sm:$0xf]
    %v337 = vld [vmem:[%s326 + $0x3c] sm:$0xff]
    %v338 = vld [vmem:[%s326 + $0x44] sm:$0xf]
    %v339 = vld [vmem:[%s326 + $0x48] sm:$0xff]
    %v340 = vld [vmem:[%s326 + $0x50] sm:$0xf]
    %v341 = vld [vmem:[%s326 + $0x54] sm:$0xff]
    %v342 = vld [vmem:[%s326 + $0x5c] sm:$0xf]
    %v343 = vld [vmem:[%s326 + $0x60] sm:$0xff]
    %v344 = vld [vmem:[%s326 + $0x68] sm:$0xf]
    %v345 = vld [vmem:[%s326 + $0x6c] sm:$0xff]
    %v346 = vld [vmem:[%s326 + $0x74] sm:$0xf]
    %v347 = vld [vmem:[%s326 + $0x78] sm:$0xff]
    %v348 = vld [vmem:[%s326 + $0x80] sm:$0xf]
    %v349 = vld [vmem:[%s326 + $0x84] sm:$0xff]
    %v350 = vld [vmem:[%s326 + $0x8c] sm:$0xf]
    %v351 = vld [vmem:[%s326 + $0x90] sm:$0xff]
    %v352 = vld [vmem:[%s326 + $0x98] sm:$0xf]
    %v353 = vld [vmem:[%s326 + $0x9c] sm:$0xff]
    %v354 = vld [vmem:[%s326 + $0xa4] sm:$0xf]
    %v355 = vld [vmem:[%s326 + $0xa8] sm:$0xff]
    %v356 = vld [vmem:[%s326 + $0xb0] sm:$0xf]
    %v357 = vld [vmem:[%s326 + $0xb4] sm:$0xff]
    %v358 = vld [vmem:[%s326 + $0xbc] sm:$0xf]
    %s359 = scalar_lea.vmem [#allocation7], 3
    %v360 = vld [vmem:[%s359] sm:$0x7]
    %v362 = vlaneseq
    %v363 = vshrl.u32 %v362, 7
    %v364 = vsub.s32 0, %v363
    %v365 = vrot.slane %v360, %v364
    %v366 = vlaneseq
    %v367 = vshrl.u32 %v366, 7
    %v368 = vsub.s32 1, %v367
    %v369 = vrot.slane %v360, %v368
    %v370 = vlaneseq
    %v371 = vshrl.u32 %v370, 7
    %v372 = vsub.s32 2, %v371
    %v373 = vrot.slane %v360, %v372
    %v409 = vunpack.c.l.b16 %v327
    %v410 = vunpack.c.h.b16 %v327
    %v411 = vunpack.c.l.b16 %v328
    %v412 = vunpack.c.l.b16 %v329
    %v413 = vunpack.c.h.b16 %v329
    %v414 = vunpack.c.l.b16 %v330
    %v415 = vunpack.c.l.b16 %v331
    %v416 = vunpack.c.h.b16 %v331
    %v417 = vunpack.c.l.b16 %v332
    %v418 = vunpack.c.l.b16 %v333
    %v419 = vunpack.c.h.b16 %v333
    %v420 = vunpack.c.l.b16 %v334
    %v421 = vunpack.c.l.b16 %v335
    %v422 = vunpack.c.h.b16 %v335
    %v423 = vunpack.c.l.b16 %v336
    %v424 = vunpack.c.l.b16 %v337
    %v425 = vunpack.c.h.b16 %v337
    %v426 = vunpack.c.l.b16 %v338
    %v427 = vunpack.c.l.b16 %v339
    %v428 = vunpack.c.h.b16 %v339
    %v429 = vunpack.c.l.b16 %v340
    %v430 = vunpack.c.l.b16 %v341
    %v431 = vunpack.c.h.b16 %v341
    %v432 = vunpack.c.l.b16 %v342
    %v433 = vunpack.c.l.b16 %v343
    %v434 = vunpack.c.h.b16 %v343
    %v435 = vunpack.c.l.b16 %v344
    %v436 = vunpack.c.l.b16 %v345
    %v437 = vunpack.c.h.b16 %v345
    %v438 = vunpack.c.l.b16 %v346
    %v439 = vunpack.c.l.b16 %v347
    %v440 = vunpack.c.h.b16 %v347
    %v441 = vunpack.c.l.b16 %v348
    %v442 = vunpack.c.l.b16 %v349
    %v443 = vunpack.c.h.b16 %v349
    %v444 = vunpack.c.l.b16 %v350
    %v445 = vunpack.c.l.b16 %v351
    %v446 = vunpack.c.h.b16 %v351
    %v447 = vunpack.c.l.b16 %v352
    %v448 = vunpack.c.l.b16 %v353
    %v449 = vunpack.c.h.b16 %v353
    %v450 = vunpack.c.l.b16 %v354
    %v451 = vunpack.c.l.b16 %v355
    %v452 = vunpack.c.h.b16 %v355
    %v453 = vunpack.c.l.b16 %v356
    %v454 = vunpack.c.l.b16 %v357
    %v455 = vunpack.c.h.b16 %v357
    %v456 = vunpack.c.l.b16 %v358
    %v457 = vpack.c.b16 %v412, %v409
    %v458 = vpack.c.b16 %v413, %v410
    %v459 = vpack.c.b16 %v414, %v411
    %v460 = vpack.c.b16 %v418, %v415
    %v461 = vpack.c.b16 %v419, %v416
    %v462 = vpack.c.b16 %v420, %v417
    %v463 = vpack.c.b16 %v424, %v421
    %v464 = vpack.c.b16 %v425, %v422
    %v465 = vpack.c.b16 %v426, %v423
    %v466 = vpack.c.b16 %v430, %v427
    %v467 = vpack.c.b16 %v431, %v428
    %v468 = vpack.c.b16 %v432, %v429
    %v469 = vpack.c.b16 %v436, %v433
    %v470 = vpack.c.b16 %v437, %v434
    %v471 = vpack.c.b16 %v438, %v435
    %v472 = vpack.c.b16 %v442, %v439
    %v473 = vpack.c.b16 %v443, %v440
    %v474 = vpack.c.b16 %v444, %v441
    %v475 = vpack.c.b16 %v448, %v445
    %v476 = vpack.c.b16 %v449, %v446
    %v477 = vpack.c.b16 %v450, %v447
    %v478 = vpack.c.b16 %v454, %v451
    %v479 = vpack.c.b16 %v455, %v452
    %v480 = vpack.c.b16 %v456, %v453
    %505 = vmatprep.subr.bf16.mxu0 %v458
    %506 = vmatpush1.bf16.msra.mxu0 %v457
    %507 = vmatprep.subr.bf16.mxu0 %v461
    %508 = vmatpush1.bf16.msra.mxu0 %v460
    %509 = vmatprep.subr.bf16.mxu0 %v464
    %510 = vmatpush1.bf16.msra.mxu0 %v463
    %511 = vmatprep.subr.bf16.mxu0 %v467
    %512 = vmatpush1.bf16.msra.mxu0 %v466
    %513 = vmatprep.subr.bf16.mxu0 %v470
    %514 = vmatpush1.bf16.msra.mxu0 %v469
    %515 = vmatprep.subr.bf16.mxu0 %v473
    %516 = vmatpush1.bf16.msra.mxu0 %v472
    %517 = vmatprep.subr.bf16.mxu0 %v476
    %518 = vmatpush1.bf16.msra.mxu0 %v475
    %519 = vmatprep.subr.bf16.mxu0 %v479
    %520 = vmatpush1.bf16.msra.mxu0 %v478
    %521 = vmatprep.subr.bf16.mxu0 0
    %522 = vmatpush1.bf16.msra.mxu0 0
    %523 = vmatprep.subr.bf16.mxu0 0
    %524 = vmatpush1.bf16.msra.mxu0 0
    %525 = vmatprep.subr.bf16.mxu0 0
    %526 = vmatpush1.bf16.msra.mxu0 0
    %527 = vmatprep.subr.bf16.mxu0 0
    %528 = vmatpush1.bf16.msra.mxu0 0
    %529 = vmatprep.subr.bf16.mxu0 0
    %530 = vmatpush1.bf16.msra.mxu0 0
    %531 = vmatprep.subr.bf16.mxu0 0
    %532 = vmatpush1.bf16.msra.mxu0 0
    %533 = vmatprep.subr.bf16.mxu0 0
    %534 = vmatpush1.bf16.msra.mxu0 0
    %535 = vmatprep.subr.bf16.mxu0 0
    %536 = vmatpush1.bf16.msra.mxu0 0
    %537 = vmatprep.mubr.bf16.mxu0 0
    %538 = vmatmul.mubr.bf16.gmra.mrb[0].mxu0 %v325
    %v539 = vpop.f32.mrb[0].mxu0
    %v540 = vadd.f32 %v365, %v539
    %v541 = vpop.f32.mrb[0].mxu0
    %v542 = vadd.f32 %v369, %v541
    %v543 = vpop.f32.mrb[0].mxu0
    %v544 = vpop.f32.mrb[0].mxu0
    %545 = vdwg.mxu0
    %546 = vmatprep.subr.bf16.mxu0 0
    %547 = vmatpush1.bf16.msra.mxu0 %v459
    %548 = vmatprep.subr.bf16.mxu0 0
    %549 = vmatpush1.bf16.msra.mxu0 %v462
    %550 = vmatprep.subr.bf16.mxu0 0
    %551 = vmatpush1.bf16.msra.mxu0 %v465
    %552 = vmatprep.subr.bf16.mxu0 0
    %553 = vmatpush1.bf16.msra.mxu0 %v468
    %554 = vmatprep.subr.bf16.mxu0 0
    %555 = vmatpush1.bf16.msra.mxu0 %v471
    %556 = vmatprep.subr.bf16.mxu0 0
    %557 = vmatpush1.bf16.msra.mxu0 %v474
    %558 = vmatprep.subr.bf16.mxu0 0
    %559 = vmatpush1.bf16.msra.mxu0 %v477
    %560 = vmatprep.subr.bf16.mxu0 0
    %561 = vmatpush1.bf16.msra.mxu0 %v480
    %562 = vmatprep.subr.bf16.mxu0 0
    %563 = vmatpush1.bf16.msra.mxu0 0
    %564 = vmatprep.subr.bf16.mxu0 0
    %565 = vmatpush1.bf16.msra.mxu0 0
    %566 = vmatprep.subr.bf16.mxu0 0
    %567 = vmatpush1.bf16.msra.mxu0 0
    %568 = vmatprep.subr.bf16.mxu0 0
    %569 = vmatpush1.bf16.msra.mxu0 0
    %570 = vmatprep.subr.bf16.mxu0 0
    %571 = vmatpush1.bf16.msra.mxu0 0
    %572 = vmatprep.subr.bf16.mxu0 0
    %573 = vmatpush1.bf16.msra.mxu0 0
    %574 = vmatprep.subr.bf16.mxu0 0
    %575 = vmatpush1.bf16.msra.mxu0 0
    %576 = vmatprep.subr.bf16.mxu0 0
    %577 = vmatpush1.bf16.msra.mxu0 0
    %578 = vmatprep.mubr.bf16.mxu0 0
    %579 = vmatmul.mubr.bf16.gmra.mrb[0].mxu0 %v325
    %v580 = vpop.f32.mrb[0].mxu0
    %v581 = vadd.f32 %v373, %v580
    %v582 = vpop.f32.mrb[0].mxu0
    %v583 = vpop.f32.mrb[0].mxu0
    %v584 = vpop.f32.mrb[0].mxu0
    %585 = vdwg.mxu0
    %v586 = vxor.u32 %v540, 2147483648
    %v587 = vmul.f32 %v586, 1.442695
    %v588 = vpow.pop %v587
    %v589 = vadd.f32 %v588, 1.0
    %v590 = vrcp.pop %v589
    %v591 = vmul.f32 1.0, %v590
    %v592 = vmax.f32 %v542, 0.0
    %v593 = vsub.f32 %v592, %v581
    %v594 = vmul.f32 %v591, %v593
    %v595 = vadd.f32 %v581, %v594
    %v596 = vpack.c.bf16 %v595, %v595
    %s597 = scalar_lea.vmem [#allocation5], 384
    %v598 = vld [vmem:[%s597] sm:$0xff]
    %v599 = vld [vmem:[%s597 + $0x8] sm:$0xf]
    %v600 = vld [vmem:[%s597 + $0xc] sm:$0xff]
    %v601 = vld [vmem:[%s597 + $0x14] sm:$0xf]
    %v602 = vld [vmem:[%s597 + $0x18] sm:$0xff]
    %v603 = vld [vmem:[%s597 + $0x20] sm:$0xf]
    %v604 = vld [vmem:[%s597 + $0x24] sm:$0xff]
    %v605 = vld [vmem:[%s597 + $0x2c] sm:$0xf]
    %v606 = vld [vmem:[%s597 + $0x30] sm:$0xff]
    %v607 = vld [vmem:[%s597 + $0x38] sm:$0xf]
    %v608 = vld [vmem:[%s597 + $0x3c] sm:$0xff]
    %v609 = vld [vmem:[%s597 + $0x44] sm:$0xf]
    %v610 = vld [vmem:[%s597 + $0x48] sm:$0xff]
    %v611 = vld [vmem:[%s597 + $0x50] sm:$0xf]
    %v612 = vld [vmem:[%s597 + $0x54] sm:$0xff]
    %v613 = vld [vmem:[%s597 + $0x5c] sm:$0xf]
    %v614 = vld [vmem:[%s597 + $0x60] sm:$0xff]
    %v615 = vld [vmem:[%s597 + $0x68] sm:$0xf]
    %v616 = vld [vmem:[%s597 + $0x6c] sm:$0xff]
    %v617 = vld [vmem:[%s597 + $0x74] sm:$0xf]
    %v618 = vld [vmem:[%s597 + $0x78] sm:$0xff]
    %v619 = vld [vmem:[%s597 + $0x80] sm:$0xf]
    %v620 = vld [vmem:[%s597 + $0x84] sm:$0xff]
    %v621 = vld [vmem:[%s597 + $0x8c] sm:$0xf]
    %v622 = vld [vmem:[%s597 + $0x90] sm:$0xff]
    %v623 = vld [vmem:[%s597 + $0x98] sm:$0xf]
    %v624 = vld [vmem:[%s597 + $0x9c] sm:$0xff]
    %v625 = vld [vmem:[%s597 + $0xa4] sm:$0xf]
    %v626 = vld [vmem:[%s597 + $0xa8] sm:$0xff]
    %v627 = vld [vmem:[%s597 + $0xb0] sm:$0xf]
    %v628 = vld [vmem:[%s597 + $0xb4] sm:$0xff]
    %v629 = vld [vmem:[%s597 + $0xbc] sm:$0xf]
    %s630 = scalar_lea.vmem [#allocation7], 6
    %v631 = vld [vmem:[%s630] sm:$0x7]
    %v633 = vlaneseq
    %v634 = vshrl.u32 %v633, 7
    %v635 = vsub.s32 0, %v634
    %v636 = vrot.slane %v631, %v635
    %v637 = vlaneseq
    %v638 = vshrl.u32 %v637, 7
    %v639 = vsub.s32 1, %v638
    %v640 = vrot.slane %v631, %v639
    %v641 = vlaneseq
    %v642 = vshrl.u32 %v641, 7
    %v643 = vsub.s32 2, %v642
    %v644 = vrot.slane %v631, %v643
    %v680 = vunpack.c.l.b16 %v598
    %v681 = vunpack.c.h.b16 %v598
    %v682 = vunpack.c.l.b16 %v599
    %v683 = vunpack.c.l.b16 %v600
    %v684 = vunpack.c.h.b16 %v600
    %v685 = vunpack.c.l.b16 %v601
    %v686 = vunpack.c.l.b16 %v602
    %v687 = vunpack.c.h.b16 %v602
    %v688 = vunpack.c.l.b16 %v603
    %v689 = vunpack.c.l.b16 %v604
    %v690 = vunpack.c.h.b16 %v604
    %v691 = vunpack.c.l.b16 %v605
    %v692 = vunpack.c.l.b16 %v606
    %v693 = vunpack.c.h.b16 %v606
    %v694 = vunpack.c.l.b16 %v607
    %v695 = vunpack.c.l.b16 %v608
    %v696 = vunpack.c.h.b16 %v608
    %v697 = vunpack.c.l.b16 %v609
    %v698 = vunpack.c.l.b16 %v610
    %v699 = vunpack.c.h.b16 %v610
    %v700 = vunpack.c.l.b16 %v611
    %v701 = vunpack.c.l.b16 %v612
    %v702 = vunpack.c.h.b16 %v612
    %v703 = vunpack.c.l.b16 %v613
    %v704 = vunpack.c.l.b16 %v614
    %v705 = vunpack.c.h.b16 %v614
    %v706 = vunpack.c.l.b16 %v615
    %v707 = vunpack.c.l.b16 %v616
    %v708 = vunpack.c.h.b16 %v616
    %v709 = vunpack.c.l.b16 %v617
    %v710 = vunpack.c.l.b16 %v618
    %v711 = vunpack.c.h.b16 %v618
    %v712 = vunpack.c.l.b16 %v619
    %v713 = vunpack.c.l.b16 %v620
    %v714 = vunpack.c.h.b16 %v620
    %v715 = vunpack.c.l.b16 %v621
    %v716 = vunpack.c.l.b16 %v622
    %v717 = vunpack.c.h.b16 %v622
    %v718 = vunpack.c.l.b16 %v623
    %v719 = vunpack.c.l.b16 %v624
    %v720 = vunpack.c.h.b16 %v624
    %v721 = vunpack.c.l.b16 %v625
    %v722 = vunpack.c.l.b16 %v626
    %v723 = vunpack.c.h.b16 %v626
    %v724 = vunpack.c.l.b16 %v627
    %v725 = vunpack.c.l.b16 %v628
    %v726 = vunpack.c.h.b16 %v628
    %v727 = vunpack.c.l.b16 %v629
    %v728 = vpack.c.b16 %v683, %v680
    %v729 = vpack.c.b16 %v684, %v681
    %v730 = vpack.c.b16 %v685, %v682
    %v731 = vpack.c.b16 %v689, %v686
    %v732 = vpack.c.b16 %v690, %v687
    %v733 = vpack.c.b16 %v691, %v688
    %v734 = vpack.c.b16 %v695, %v692
    %v735 = vpack.c.b16 %v696, %v693
    %v736 = vpack.c.b16 %v697, %v694
    %v737 = vpack.c.b16 %v701, %v698
    %v738 = vpack.c.b16 %v702, %v699
    %v739 = vpack.c.b16 %v703, %v700
    %v740 = vpack.c.b16 %v707, %v704
    %v741 = vpack.c.b16 %v708, %v705
    %v742 = vpack.c.b16 %v709, %v706
    %v743 = vpack.c.b16 %v713, %v710
    %v744 = vpack.c.b16 %v714, %v711
    %v745 = vpack.c.b16 %v715, %v712
    %v746 = vpack.c.b16 %v719, %v716
    %v747 = vpack.c.b16 %v720, %v717
    %v748 = vpack.c.b16 %v721, %v718
    %v749 = vpack.c.b16 %v725, %v722
    %v750 = vpack.c.b16 %v726, %v723
    %v751 = vpack.c.b16 %v727, %v724
    %776 = vmatprep.subr.bf16.mxu0 %v729
    %777 = vmatpush1.bf16.msra.mxu0 %v728
    %778 = vmatprep.subr.bf16.mxu0 %v732
    %779 = vmatpush1.bf16.msra.mxu0 %v731
    %780 = vmatprep.subr.bf16.mxu0 %v735
    %781 = vmatpush1.bf16.msra.mxu0 %v734
    %782 = vmatprep.subr.bf16.mxu0 %v738
    %783 = vmatpush1.bf16.msra.mxu0 %v737
    %784 = vmatprep.subr.bf16.mxu0 %v741
    %785 = vmatpush1.bf16.msra.mxu0 %v740
    %786 = vmatprep.subr.bf16.mxu0 %v744
    %787 = vmatpush1.bf16.msra.mxu0 %v743
    %788 = vmatprep.subr.bf16.mxu0 %v747
    %789 = vmatpush1.bf16.msra.mxu0 %v746
    %790 = vmatprep.subr.bf16.mxu0 %v750
    %791 = vmatpush1.bf16.msra.mxu0 %v749
    %792 = vmatprep.subr.bf16.mxu0 0
    %793 = vmatpush1.bf16.msra.mxu0 0
    %794 = vmatprep.subr.bf16.mxu0 0
    %795 = vmatpush1.bf16.msra.mxu0 0
    %796 = vmatprep.subr.bf16.mxu0 0
    %797 = vmatpush1.bf16.msra.mxu0 0
    %798 = vmatprep.subr.bf16.mxu0 0
    %799 = vmatpush1.bf16.msra.mxu0 0
    %800 = vmatprep.subr.bf16.mxu0 0
    %801 = vmatpush1.bf16.msra.mxu0 0
    %802 = vmatprep.subr.bf16.mxu0 0
    %803 = vmatpush1.bf16.msra.mxu0 0
    %804 = vmatprep.subr.bf16.mxu0 0
    %805 = vmatpush1.bf16.msra.mxu0 0
    %806 = vmatprep.subr.bf16.mxu0 0
    %807 = vmatpush1.bf16.msra.mxu0 0
    %808 = vmatprep.mubr.bf16.mxu0 0
    %809 = vmatmul.mubr.bf16.gmra.mrb[0].mxu0 %v596
    %v810 = vpop.f32.mrb[0].mxu0
    %v811 = vadd.f32 %v636, %v810
    %v812 = vpop.f32.mrb[0].mxu0
    %v813 = vadd.f32 %v640, %v812
    %v814 = vpop.f32.mrb[0].mxu0
    %v815 = vpop.f32.mrb[0].mxu0
    %816 = vdwg.mxu0
    %817 = vmatprep.subr.bf16.mxu0 0
    %818 = vmatpush1.bf16.msra.mxu0 %v730
    %819 = vmatprep.subr.bf16.mxu0 0
    %820 = vmatpush1.bf16.msra.mxu0 %v733
    %821 = vmatprep.subr.bf16.mxu0 0
    %822 = vmatpush1.bf16.msra.mxu0 %v736
    %823 = vmatprep.subr.bf16.mxu0 0
    %824 = vmatpush1.bf16.msra.mxu0 %v739
    %825 = vmatprep.subr.bf16.mxu0 0
    %826 = vmatpush1.bf16.msra.mxu0 %v742
    %827 = vmatprep.subr.bf16.mxu0 0
    %828 = vmatpush1.bf16.msra.mxu0 %v745
    %829 = vmatprep.subr.bf16.mxu0 0
    %830 = vmatpush1.bf16.msra.mxu0 %v748
    %831 = vmatprep.subr.bf16.mxu0 0
    %832 = vmatpush1.bf16.msra.mxu0 %v751
    %833 = vmatprep.subr.bf16.mxu0 0
    %834 = vmatpush1.bf16.msra.mxu0 0
    %835 = vmatprep.subr.bf16.mxu0 0
    %836 = vmatpush1.bf16.msra.mxu0 0
    %837 = vmatprep.subr.bf16.mxu0 0
    %838 = vmatpush1.bf16.msra.mxu0 0
    %839 = vmatprep.subr.bf16.mxu0 0
    %840 = vmatpush1.bf16.msra.mxu0 0
    %841 = vmatprep.subr.bf16.mxu0 0
    %842 = vmatpush1.bf16.msra.mxu0 0
    %843 = vmatprep.subr.bf16.mxu0 0
    %844 = vmatpush1.bf16.msra.mxu0 0
    %845 = vmatprep.subr.bf16.mxu0 0
    %846 = vmatpush1.bf16.msra.mxu0 0
    %847 = vmatprep.subr.bf16.mxu0 0
    %848 = vmatpush1.bf16.msra.mxu0 0
    %849 = vmatprep.mubr.bf16.mxu0 0
    %850 = vmatmul.mubr.bf16.gmra.mrb[0].mxu0 %v596
    %v851 = vpop.f32.mrb[0].mxu0
    %v852 = vadd.f32 %v644, %v851
    %v853 = vpop.f32.mrb[0].mxu0
    %v854 = vpop.f32.mrb[0].mxu0
    %v855 = vpop.f32.mrb[0].mxu0
    %856 = vdwg.mxu0
    %v857 = vxor.u32 %v811, 2147483648
    %v858 = vmul.f32 %v857, 1.442695
    %v859 = vpow.pop %v858
    %v860 = vadd.f32 %v859, 1.0
    %v861 = vrcp.pop %v860
    %v862 = vmul.f32 1.0, %v861
    %v863 = vmax.f32 %v813, 0.0
    %v864 = vsub.f32 %v863, %v852
    %v865 = vmul.f32 %v862, %v864
    %v866 = vadd.f32 %v852, %v865
    %867 = vst [vmem:[#allocation8] sm:$0xff] %v866
    // Predicated region
    $region26: #{tpu_custom_call.1} parent=1 // pred_check
      _
    $region27: #{tpu_custom_call.1} parent=1 // pred_check_branch
      %869 = sbr.rel (0) target = $region29
    $region28: #{tpu_custom_call.1} parent=1 // pred_region
      %s871 = ssub.s32 128, 128
      %872 = vsyncadd [#allocation4], %s871
      %s874 = sshll.u32 [#allocation8], 4
      %s875 = int_to_ptr.vmem [resolvable:$true] %s874
      %877 = dma.vmem_to_hbm [thread:$0]  %s875, 128, %s3, [#allocation4]
    $region29: #{tpu_custom_call.1} parent=1 // pred_fallthru
      _
    // Predicated region
    $region30: #{tpu_custom_call.1} parent=1 // pred_check
      _
    $region31: #{tpu_custom_call.1} parent=1 // pred_check_branch
      %879 = sbr.rel (0) target = $region33
    $region32: #{tpu_custom_call.1} parent=1 // pred_region
      %880 = dma.done [#allocation4], 128
    $region33: #{tpu_custom_call.1} parent=1 // pred_fallthru
      _
    %881 = vsyncpa [#allocation3], 1
    %882 = vsyncpa [#allocation6], 1
    %883 = vsyncpa [#allocation4], 1

</llo_original>
